<compile_context>
chip_gen: v7x
topology: tpu7x:2x2x1
jax: 0.10.0
libtpu: 0.0.40
codegen_flags: <defaults>
</compile_context>

<pallas_src>
import jax
import jax.numpy as jnp
from jax.experimental import pallas as pl
from jax.experimental.pallas import tpu as pltpu
from typing import NamedTuple

_LANE = 128
_SUBLANE = 8


def _round_up(x, m):
    return ((x + m - 1) // m) * m


class PackedNet(NamedTuple):
    w1: jax.Array      # (obs_size, hid_pad)  compute dtype
    b1: jax.Array      # (1, hid_pad)         float32
    w2: jax.Array      # (hid_pad, act_pad)   compute dtype
    b2: jax.Array      # (1, act_pad)         float32
    hidden: int
    n_actions: int


def pack_params(w1, b1, w2, b2, *, compute_dtype=jnp.bfloat16):
    """Pack/pad parameters once (outside the per-step forward path)."""
    obs_size, hidden = w1.shape
    n_actions = w2.shape[1]
    hid_pad = _round_up(hidden, _LANE)        # 32 -> 128 (native MXU K on v5e too)
    act_pad = _round_up(n_actions, _SUBLANE)  # 2  -> 8   (narrow, lane-masked store is fine)

    w1p = jnp.zeros((obs_size, hid_pad), compute_dtype)
    w1p = w1p.at[:, :hidden].set(w1.astype(compute_dtype))
    b1p = jnp.zeros((1, hid_pad), jnp.float32)
    b1p = b1p.at[0, :hidden].set(jnp.reshape(b1, (hidden,)).astype(jnp.float32))

    w2p = jnp.zeros((hid_pad, act_pad), compute_dtype)
    w2p = w2p.at[:hidden, :n_actions].set(w2.astype(compute_dtype))
    b2p = jnp.zeros((1, act_pad), jnp.float32)
    b2p = b2p.at[0, :n_actions].set(jnp.reshape(b2, (n_actions,)).astype(jnp.float32))

    return PackedNet(w1p, b1p, w2p, b2p, hidden, n_actions)


def _mlp_kernel(x_ref, w1_ref, b1_ref, w2_ref, b2_ref, o_ref):
    # x_ref : (TILE_B, obs_size)     original dtype (cast in-kernel)
    # w1_ref: (obs_size, hid_pad)    compute dtype, VMEM-resident across grid steps
    # b1_ref: (1, hid_pad)  f32      VMEM-resident
    # w2_ref: (hid_pad, act_pad)     compute dtype, VMEM-resident
    # b2_ref: (1, act_pad)  f32      VMEM-resident
    # o_ref : (TILE_B, act_pad) f32
    x = x_ref[...].astype(w1_ref.dtype)
    h = jnp.dot(x, w1_ref[...], preferred_element_type=jnp.float32)
    h = jnp.maximum(h + b1_ref[...], 0.0)                       # bias + ReLU in f32
    o = jnp.dot(h.astype(w2_ref.dtype), w2_ref[...],
                preferred_element_type=jnp.float32)
    o_ref[...] = (o + b2_ref[...]).astype(o_ref.dtype)


def net_forward(x, params: PackedNet, *, tile_b=4096):
    """Forward pass of Net: ReLU(x @ w1 + b1) @ w2 + b2, with pre-packed params."""
    B, obs_size = x.shape
    hid_pad = params.w1.shape[1]
    act_pad = params.w2.shape[1]
    hidden = params.hidden
    n_actions = params.n_actions

    # Batch tiling: one tile when B fits; >= 2 tiles for large B (v7x megacore).
    tile_b = max(_SUBLANE, (int(tile_b) // _SUBLANE) * _SUBLANE)
    if B >= 2048:
        tile_b = min(tile_b, _round_up((B + 1) // 2, _SUBLANE))
    tile_b = min(tile_b, _round_up(B, _SUBLANE))
    b_pad = _round_up(B, tile_b)
    grid = (b_pad // tile_b,)

    # Only batch padding (cheap, zeros); no feature padding / ones column / cast.
    x_in = x if b_pad == B else jnp.pad(x, ((0, b_pad - B), (0, 0)))

    w_itemsize = jnp.dtype(params.w1.dtype).itemsize
    cost = pl.CostEstimate(
        flops=2 * B * (obs_size * hidden + hidden * n_actions),
        transcendentals=0,
        bytes_accessed=(B * obs_size * jnp.dtype(x.dtype).itemsize
                        + obs_size * hid_pad * w_itemsize + hid_pad * 4
                        + hid_pad * act_pad * w_itemsize + act_pad * 4
                        + B * n_actions * 4),
    )

    out_padded = pl.pallas_call(
        _mlp_kernel,
        out_shape=jax.ShapeDtypeStruct((b_pad, act_pad), jnp.float32),
        grid=grid,
        in_specs=[
            pl.BlockSpec((tile_b, obs_size), lambda i: (i, 0)),   # x: tiled over batch
            pl.BlockSpec((obs_size, hid_pad), lambda i: (0, 0)),  # W1: resident
            pl.BlockSpec((1, hid_pad), lambda i: (0, 0)),         # b1: resident
            pl.BlockSpec((hid_pad, act_pad), lambda i: (0, 0)),   # W2: resident
            pl.BlockSpec((1, act_pad), lambda i: (0, 0)),         # b2: resident
        ],
        out_specs=pl.BlockSpec((tile_b, act_pad), lambda i: (i, 0)),
        compiler_params=pltpu.CompilerParams(
            dimension_semantics=("parallel",),  # megacore batch split on v7x
        ),
        cost_estimate=cost,
    )(x_in, params.w1, params.b1, params.w2, params.b2)

    return out_padded[:B, :n_actions].astype(x.dtype)


def init_params(key, obs_size, hidden_size, n_actions):
    """PyTorch nn.Linear-style init (uniform +/- 1/sqrt(fan_in)); weights stored (in, out)."""
    k1, k2, k3, k4 = jax.random.split(key, 4)
    bound1 = 1.0 / jnp.sqrt(obs_size)
    bound2 = 1.0 / jnp.sqrt(hidden_size)
    w1 = jax.random.uniform(k1, (obs_size, hidden_size), jnp.float32, -bound1, bound1)
    b1 = jax.random.uniform(k2, (hidden_size,), jnp.float32, -bound1, bound1)
    w2 = jax.random.uniform(k3, (hidden_size, n_actions), jnp.float32, -bound2, bound2)
    b2 = jax.random.uniform(k4, (n_actions,), jnp.float32, -bound2, bound2)
    return w1, b1, w2, b2


def _ref_forward(x, w1, b1, w2, b2):
    return jnp.maximum(x @ w1 + b1, 0.0) @ w2 + b2


if __name__ == "__main__":
    # CartPole-flavored shapes: obs_size=4, hidden=32, n_actions=2.
    obs_size, hidden_size, n_actions = 4, 32, 2

    key = jax.random.PRNGKey(0)
    kx1, kx2, kp = jax.random.split(key, 3)
    w1, b1, w2, b2 = init_params(kp, obs_size, hidden_size, n_actions)

    # 1) Small batch, f32 packed weights: exact check against the pure-JAX reference.
    packed_f32 = pack_params(w1, b1, w2, b2, compute_dtype=jnp.float32)
    x_small = jax.random.normal(kx1, (8, obs_size), jnp.float32)
    out_f32 = jax.block_until_ready(net_forward(x_small, packed_f32))
    ref_small = _ref_forward(x_small, w1, b1, w2, b2)
    assert out_f32.shape == (8, n_actions)
    assert jnp.allclose(out_f32, ref_small, atol=1e-5, rtol=1e-5)

    # 2) Larger, non-multiple-of-tile batch, bf16 packed weights: exercises the
    #    multi-step batch grid, resident weights, batch padding, and the bf16 MXU path.
    packed_bf16 = pack_params(w1, b1, w2, b2, compute_dtype=jnp.bfloat16)
    x_big = jax.random.normal(kx2, (300, obs_size), jnp.float32)
    out_bf16 = jax.block_until_ready(net_forward(x_big, packed_bf16, tile_b=128))
    ref_big = _ref_forward(x_big, w1, b1, w2, b2)
    assert out_bf16.shape == (300, n_actions)
    assert jnp.allclose(out_bf16, ref_big, atol=5e-2, rtol=5e-2)

    print("KERNEL_OK")
</pallas_src>

<mosaic_0001>
module attributes {stable_mosaic.version = 11 : i64} {
  func.func @_mlp_kernel(%arg0: i32, %arg1: memref<8x4xf32, #tpu.memory_space<vmem>>, %arg2: memref<4x128xf32, #tpu.memory_space<vmem>>, %arg3: memref<1x128xf32, #tpu.memory_space<vmem>>, %arg4: memref<128x8xf32, #tpu.memory_space<vmem>>, %arg5: memref<1x8xf32, #tpu.memory_space<vmem>>, %arg6: memref<8x8xf32, #tpu.memory_space<vmem>>) attributes {dimension_semantics = [#tpu.dimension_semantics<parallel>], iteration_bounds = array<i64: 1>, scalar_prefetch = 0 : i64, scratch_operands = 0 : i64, tpu.core_type = #tpu.core_type<tc>, window_params = [{transform_indices = @transform_0, window_bounds = array<i64: 8, 4>}, {pipeline_mode = #tpu.pipeline_mode<synchronous>, transform_indices = @transform_1, window_bounds = array<i64: 4, 128>}, {pipeline_mode = #tpu.pipeline_mode<synchronous>, transform_indices = @transform_2, window_bounds = array<i64: 1, 128>}, {pipeline_mode = #tpu.pipeline_mode<synchronous>, transform_indices = @transform_3, window_bounds = array<i64: 128, 8>}, {pipeline_mode = #tpu.pipeline_mode<synchronous>, transform_indices = @transform_4, window_bounds = array<i64: 1, 8>}, {transform_indices = @transform_5, window_bounds = array<i64: 8, 8>}]} {
    %c0 = arith.constant 0 : index
    %c0_0 = arith.constant 0 : index
    %0 = vector.load %arg1[%c0, %c0_0] : memref<8x4xf32, #tpu.memory_space<vmem>>, vector<8x4xf32>
    %c0_1 = arith.constant 0 : index
    %c0_2 = arith.constant 0 : index
    %1 = vector.load %arg2[%c0_1, %c0_2] : memref<4x128xf32, #tpu.memory_space<vmem>>, vector<4x128xf32>
    %cst = arith.constant dense<0.000000e+00> : vector<8x128xf32>
    %2 = tpu.matmul %0, %1, %cst {dimension_numbers = #tpu.dot_dimension_numbers<[1], [0], [0], [1], [0, 0, 1, 1], [], []>} : vector<8x4xf32>, vector<4x128xf32>, vector<8x128xf32> -> vector<8x128xf32>
    %c0_3 = arith.constant 0 : index
    %c0_4 = arith.constant 0 : index
    %3 = vector.load %arg3[%c0_3, %c0_4] : memref<1x128xf32, #tpu.memory_space<vmem>>, vector<1x128xf32>
    %4 = vector.broadcast %3 : vector<1x128xf32> to vector<8x128xf32>
    %5 = arith.addf %2, %4 : vector<8x128xf32>
    %cst_5 = arith.constant 0.000000e+00 : f32
    %6 = vector.broadcast %cst_5 : f32 to vector<8x128xf32>
    %7 = arith.maximumf %5, %6 : vector<8x128xf32>
    %c0_6 = arith.constant 0 : index
    %c0_7 = arith.constant 0 : index
    %8 = vector.load %arg4[%c0_6, %c0_7] : memref<128x8xf32, #tpu.memory_space<vmem>>, vector<128x8xf32>
    %cst_8 = arith.constant dense<0.000000e+00> : vector<8x8xf32>
    %9 = tpu.matmul %7, %8, %cst_8 {dimension_numbers = #tpu.dot_dimension_numbers<[1], [0], [0], [1], [0, 0, 1, 1], [], []>} : vector<8x128xf32>, vector<128x8xf32>, vector<8x8xf32> -> vector<8x8xf32>
    %c0_9 = arith.constant 0 : index
    %c0_10 = arith.constant 0 : index
    %10 = vector.load %arg5[%c0_9, %c0_10] : memref<1x8xf32, #tpu.memory_space<vmem>>, vector<1x8xf32>
    %11 = vector.broadcast %10 : vector<1x8xf32> to vector<8x8xf32>
    %12 = arith.addf %9, %11 : vector<8x8xf32>
    %c0_11 = arith.constant 0 : index
    %c0_12 = arith.constant 0 : index
    %13 = vector.load %arg6[%c0_11, %c0_12] : memref<8x8xf32, #tpu.memory_space<vmem>>, vector<8x8xf32>
    tpu.vector_store %arg6[%c0_11, %c0_12], %12 {strides = array<i32>} : memref<8x8xf32, #tpu.memory_space<vmem>>, vector<8x8xf32>,
    return
  }
  func.func @transform_0(%arg0: i32) -> (i32, i32) {
    %c0_i32 = arith.constant 0 : i32
    %c0_i32_0 = arith.constant 0 : i32
    return %arg0, %c0_i32 : i32, i32
  }
  func.func @transform_1(%arg0: i32) -> (i32, i32) {
    %c0_i32 = arith.constant 0 : i32
    %c0_i32_0 = arith.constant 0 : i32
    %c0_i32_1 = arith.constant 0 : i32
    return %c0_i32, %c0_i32_0 : i32, i32
  }
  func.func @transform_2(%arg0: i32) -> (i32, i32) {
    %c0_i32 = arith.constant 0 : i32
    %c0_i32_0 = arith.constant 0 : i32
    %c0_i32_1 = arith.constant 0 : i32
    return %c0_i32, %c0_i32_0 : i32, i32
  }
  func.func @transform_3(%arg0: i32) -> (i32, i32) {
    %c0_i32 = arith.constant 0 : i32
    %c0_i32_0 = arith.constant 0 : i32
    %c0_i32_1 = arith.constant 0 : i32
    return %c0_i32, %c0_i32_0 : i32, i32
  }
  func.func @transform_4(%arg0: i32) -> (i32, i32) {
    %c0_i32 = arith.constant 0 : i32
    %c0_i32_0 = arith.constant 0 : i32
    %c0_i32_1 = arith.constant 0 : i32
    return %c0_i32, %c0_i32_0 : i32, i32
  }
  func.func @transform_5(%arg0: i32) -> (i32, i32) {
    %c0_i32 = arith.constant 0 : i32
    %c0_i32_0 = arith.constant 0 : i32
    return %arg0, %c0_i32 : i32, i32
  }
}

</mosaic_0001>

<llo_original>
// kernel: tpu_custom_call.1
$region0: #{tpu_custom_call.1}
  #allocation0 [shape = 'u32[]', space=smem, size = 0x4, offset = 0x4, fixed_abs, tag = 'smem constant byte address 0x4 - core index']
  #allocation1 [shape = 'u32[144,128]{1,0:T(1,128)}', space=vmem, size = 0x12000, scoped, tag = 'internal scratch']
  %s0 = inlined_call_operand.vmem [shape: f32[8,4], index: 0, kind: input, shape index: {}]
  %s1 = inlined_call_operand.vmem [shape: f32[4,128], index: 1, kind: input, shape index: {}]
  %s2 = inlined_call_operand.vmem [shape: f32[1,128], index: 2, kind: input, shape index: {}]
  %s3 = inlined_call_operand.vmem [shape: f32[128,8], index: 3, kind: input, shape index: {}]
  %s4 = inlined_call_operand.vmem [shape: f32[1,8], index: 4, kind: input, shape index: {}]
  %s5 = inlined_call_operand.hbm [shape: f32[8,8], index: 5, kind: output, shape index: {}]
  %s6 = sld [smem:[#allocation0]]
  $region30: #{tpu_custom_call.1} parent=0
    _
  %s8 = ssub.s32 1, %s6
  %s9 = scalar_select 0, %s8, %s6
  $region1: #{tpu_custom_call.1} parent=0
    #allocation2 [shape = 'u8[4096]{0}', space=vmem, size = 0x1000, scoped, tag = 'output window, operand 0, single buffered']
    #allocation3 [shape = 's32[1]{0}', space=sflag, size = 0x4, scoped, tag = 'scoped memory for tpu_custom_call.1']
    %10 = vsyncpa [#allocation3], 0
    // Predicated region
    $region2: #{tpu_custom_call.1} parent=1 // pred_check
      _
    $region3: #{tpu_custom_call.1} parent=1 // pred_check_branch
      %12 = sbr.rel (0) target = $region5
    $region4: #{tpu_custom_call.1} parent=1 // pred_region
      _
    $region5: #{tpu_custom_call.1} parent=1 // pred_fallthru
      _
    // Predicated region
    $region6: #{tpu_custom_call.1} parent=1 // pred_check
      _
    $region7: #{tpu_custom_call.1} parent=1 // pred_check_branch
      %14 = sbr.rel (0) target = $region9
    $region8: #{tpu_custom_call.1} parent=1 // pred_region
      _
    $region9: #{tpu_custom_call.1} parent=1 // pred_fallthru
      _
    // Predicated region
    $region10: #{tpu_custom_call.1} parent=1 // pred_check
      _
    $region11: #{tpu_custom_call.1} parent=1 // pred_check_branch
      %16 = sbr.rel (0) target = $region13
    $region12: #{tpu_custom_call.1} parent=1 // pred_region
      _
    $region13: #{tpu_custom_call.1} parent=1 // pred_fallthru
      _
    // Predicated region
    $region14: #{tpu_custom_call.1} parent=1 // pred_check
      _
    $region15: #{tpu_custom_call.1} parent=1 // pred_check_branch
      %18 = sbr.rel (0) target = $region17
    $region16: #{tpu_custom_call.1} parent=1 // pred_region
      _
    $region17: #{tpu_custom_call.1} parent=1 // pred_fallthru
      _
    // Predicated region
    $region18: #{tpu_custom_call.1} parent=1 // pred_check
      _
    $region19: #{tpu_custom_call.1} parent=1 // pred_check_branch
      %20 = sbr.rel (0) target = $region21
    $region20: #{tpu_custom_call.1} parent=1 // pred_region
      _
    $region21: #{tpu_custom_call.1} parent=1 // pred_fallthru
      _
    %v21 = vld [vmem:[%s0] sm:$0xff]
    %v22 = vld [vmem:[%s1] sm:$0xf]
    %v23 = vld [vmem:[%s2] sm:$0x1]
    %v25 = vlaneseq
    %v26 = vshrl.u32 %v25, 7
    %v27 = vsub.s32 0, %v26
    %v28 = vrot.slane %v23, %v27
    %vm30 = vcmask 31744
    %v32 = vsel %vm30, %v21, 0
    %vm34 = vcmask 1043456
    %v36 = vsel %vm34, %v22, 0
    %38 = vmatprep.subr.mxu0 0.0
    %39 = vmatpush1.msra.mxu0 %v36
    %40 = vmatprep.subr.mxu0 0.0
    %41 = vmatpush1.msra.mxu0 0.0
    %42 = vmatprep.subr.mxu0 0.0
    %43 = vmatpush1.msra.mxu0 0.0
    %44 = vmatprep.subr.mxu0 0.0
    %45 = vmatpush1.msra.mxu0 0.0
    %46 = vmatprep.subr.mxu0 0.0
    %47 = vmatpush1.msra.mxu0 0.0
    %48 = vmatprep.subr.mxu0 0.0
    %49 = vmatpush1.msra.mxu0 0.0
    %50 = vmatprep.subr.mxu0 0.0
    %51 = vmatpush1.msra.mxu0 0.0
    %52 = vmatprep.subr.mxu0 0.0
    %53 = vmatpush1.msra.mxu0 0.0
    %54 = vmatprep.subr.mxu0 0.0
    %55 = vmatpush1.msra.mxu0 0.0
    %56 = vmatprep.subr.mxu0 0.0
    %57 = vmatpush1.msra.mxu0 0.0
    %58 = vmatprep.subr.mxu0 0.0
    %59 = vmatpush1.msra.mxu0 0.0
    %60 = vmatprep.subr.mxu0 0.0
    %61 = vmatpush1.msra.mxu0 0.0
    %62 = vmatprep.subr.mxu0 0.0
    %63 = vmatpush1.msra.mxu0 0.0
    %64 = vmatprep.subr.mxu0 0.0
    %65 = vmatpush1.msra.mxu0 0.0
    %66 = vmatprep.subr.mxu0 0.0
    %67 = vmatpush1.msra.mxu0 0.0
    %68 = vmatprep.subr.mxu0 0.0
    %69 = vmatpush1.msra.mxu0 0.0
    %70 = vmatprep.subr.mxu0 0.0
    %71 = vmatpush1.msra.mxu0 0.0
    %72 = vmatprep.subr.mxu0 0.0
    %73 = vmatpush1.msra.mxu0 0.0
    %74 = vmatprep.subr.mxu0 0.0
    %75 = vmatpush1.msra.mxu0 0.0
    %76 = vmatprep.subr.mxu0 0.0
    %77 = vmatpush1.msra.mxu0 0.0
    %78 = vmatprep.subr.mxu0 0.0
    %79 = vmatpush1.msra.mxu0 0.0
    %80 = vmatprep.subr.mxu0 0.0
    %81 = vmatpush1.msra.mxu0 0.0
    %82 = vmatprep.subr.mxu0 0.0
    %83 = vmatpush1.msra.mxu0 0.0
    %84 = vmatprep.subr.mxu0 0.0
    %85 = vmatpush1.msra.mxu0 0.0
    %86 = vmatprep.subr.mxu0 0.0
    %87 = vmatpush1.msra.mxu0 0.0
    %88 = vmatprep.subr.mxu0 0.0
    %89 = vmatpush1.msra.mxu0 0.0
    %90 = vmatprep.subr.mxu0 0.0
    %91 = vmatpush1.msra.mxu0 0.0
    %92 = vmatprep.subr.mxu0 0.0
    %93 = vmatpush1.msra.mxu0 0.0
    %94 = vmatprep.subr.mxu0 0.0
    %95 = vmatpush1.msra.mxu0 0.0
    %96 = vmatprep.subr.mxu0 0.0
    %97 = vmatpush1.msra.mxu0 0.0
    %98 = vmatprep.subr.mxu0 0.0
    %99 = vmatpush1.msra.mxu0 0.0
    %100 = vmatprep.subr.mxu0 0.0
    %101 = vmatpush1.msra.mxu0 0.0
    %102 = vmatprep.mubr.f32.mxu0 0.0
    %103 = vmatmul.mubr.f32.gmra.mrb[0].mxu0 %v32
    %v104 = vpop.f32.mrb[0].mxu0
    %v105 = vadd.f32 %v28, %v104
    %v106 = vpop.f32.mrb[0].mxu0
    %107 = vdwg.mxu0
    %v108 = vmax.f32 %v105, 0.0
    %v109 = vld [vmem:[%s3] sm:$0xff]
    %v110 = vld [vmem:[%s3 + $0x8] sm:$0xff]
    %v111 = vld [vmem:[%s3 + $0x10] sm:$0xff]
    %v112 = vld [vmem:[%s3 + $0x18] sm:$0xff]
    %v113 = vld [vmem:[%s3 + $0x20] sm:$0xff]
    %v114 = vld [vmem:[%s3 + $0x28] sm:$0xff]
    %v115 = vld [vmem:[%s3 + $0x30] sm:$0xff]
    %v116 = vld [vmem:[%s3 + $0x38] sm:$0xff]
    %v117 = vld [vmem:[%s3 + $0x40] sm:$0xff]
    %v118 = vld [vmem:[%s3 + $0x48] sm:$0xff]
    %v119 = vld [vmem:[%s3 + $0x50] sm:$0xff]
    %v120 = vld [vmem:[%s3 + $0x58] sm:$0xff]
    %v121 = vld [vmem:[%s3 + $0x60] sm:$0xff]
    %v122 = vld [vmem:[%s3 + $0x68] sm:$0xff]
    %v123 = vld [vmem:[%s3 + $0x70] sm:$0xff]
    %v124 = vld [vmem:[%s3 + $0x78] sm:$0xff]
    %v125 = vld [vmem:[%s4] sm:$0x1]
    %v127 = vlaneseq
    %v128 = vshrl.u32 %v127, 7
    %v129 = vsub.s32 0, %v128
    %v130 = vrot.slane %v125, %v129
    %132 = vmatprep.subr.mxu0 0.0
    %133 = vmatpush1.msra.mxu0 %v109
    %134 = vmatprep.subr.mxu0 0.0
    %135 = vmatpush1.msra.mxu0 %v110
    %136 = vmatprep.subr.mxu0 0.0
    %137 = vmatpush1.msra.mxu0 %v111
    %138 = vmatprep.subr.mxu0 0.0
    %139 = vmatpush1.msra.mxu0 %v112
    %140 = vmatprep.subr.mxu0 0.0
    %141 = vmatpush1.msra.mxu0 %v113
    %142 = vmatprep.subr.mxu0 0.0
    %143 = vmatpush1.msra.mxu0 %v114
    %144 = vmatprep.subr.mxu0 0.0
    %145 = vmatpush1.msra.mxu0 %v115
    %146 = vmatprep.subr.mxu0 0.0
    %147 = vmatpush1.msra.mxu0 %v116
    %148 = vmatprep.subr.mxu0 0.0
    %149 = vmatpush1.msra.mxu0 %v117
    %150 = vmatprep.subr.mxu0 0.0
    %151 = vmatpush1.msra.mxu0 %v118
    %152 = vmatprep.subr.mxu0 0.0
    %153 = vmatpush1.msra.mxu0 %v119
    %154 = vmatprep.subr.mxu0 0.0
    %155 = vmatpush1.msra.mxu0 %v120
    %156 = vmatprep.subr.mxu0 0.0
    %157 = vmatpush1.msra.mxu0 %v121
    %158 = vmatprep.subr.mxu0 0.0
    %159 = vmatpush1.msra.mxu0 %v122
    %160 = vmatprep.subr.mxu0 0.0
    %161 = vmatpush1.msra.mxu0 %v123
    %162 = vmatprep.subr.mxu0 0.0
    %163 = vmatpush1.msra.mxu0 %v124
    %164 = vmatprep.subr.mxu0 0.0
    %165 = vmatpush1.msra.mxu0 0.0
    %166 = vmatprep.subr.mxu0 0.0
    %167 = vmatpush1.msra.mxu0 0.0
    %168 = vmatprep.subr.mxu0 0.0
    %169 = vmatpush1.msra.mxu0 0.0
    %170 = vmatprep.subr.mxu0 0.0
    %171 = vmatpush1.msra.mxu0 0.0
    %172 = vmatprep.subr.mxu0 0.0
    %173 = vmatpush1.msra.mxu0 0.0
    %174 = vmatprep.subr.mxu0 0.0
    %175 = vmatpush1.msra.mxu0 0.0
    %176 = vmatprep.subr.mxu0 0.0
    %177 = vmatpush1.msra.mxu0 0.0
    %178 = vmatprep.subr.mxu0 0.0
    %179 = vmatpush1.msra.mxu0 0.0
    %180 = vmatprep.subr.mxu0 0.0
    %181 = vmatpush1.msra.mxu0 0.0
    %182 = vmatprep.subr.mxu0 0.0
    %183 = vmatpush1.msra.mxu0 0.0
    %184 = vmatprep.subr.mxu0 0.0
    %185 = vmatpush1.msra.mxu0 0.0
    %186 = vmatprep.subr.mxu0 0.0
    %187 = vmatpush1.msra.mxu0 0.0
    %188 = vmatprep.subr.mxu0 0.0
    %189 = vmatpush1.msra.mxu0 0.0
    %190 = vmatprep.subr.mxu0 0.0
    %191 = vmatpush1.msra.mxu0 0.0
    %192 = vmatprep.subr.mxu0 0.0
    %193 = vmatpush1.msra.mxu0 0.0
    %194 = vmatprep.subr.mxu0 0.0
    %195 = vmatpush1.msra.mxu0 0.0
    %196 = vmatprep.mubr.f32.mxu0 0.0
    %197 = vmatmul.mubr.f32.gmra.mrb[0].mxu0 %v108
    %v198 = vpop.f32.mrb[0].mxu0
    %v199 = vadd.f32 %v130, %v198
    %v200 = vpop.f32.mrb[0].mxu0
    %201 = vdwg.mxu0
    %vm202 = vcmask 64512
    %203 = vst.msk [vmem:[#allocation2] sm:$0xff] %vm202, %v199
    // Predicated region
    $region22: #{tpu_custom_call.1} parent=1 // pred_check
      _
    $region23: #{tpu_custom_call.1} parent=1 // pred_check_branch
      %205 = sbr.rel (0) target = $region25
    $region24: #{tpu_custom_call.1} parent=1 // pred_region
      %s207 = ssub.s32 128, 128
      %208 = vsyncadd [#allocation3], %s207
      %s210 = sshll.u32 [#allocation2], 4
      %s211 = int_to_ptr.vmem [resolvable:$true] %s210
      %213 = dma.vmem_to_hbm [thread:$0]  %s211, 128, %s5, [#allocation3]
    $region25: #{tpu_custom_call.1} parent=1 // pred_fallthru
      _
    // Predicated region
    $region26: #{tpu_custom_call.1} parent=1 // pred_check
      _
    $region27: #{tpu_custom_call.1} parent=1 // pred_check_branch
      %215 = sbr.rel (0) target = $region29
    $region28: #{tpu_custom_call.1} parent=1 // pred_region
      %216 = dma.done [#allocation3], 128
    $region29: #{tpu_custom_call.1} parent=1 // pred_fallthru
      _
    %217 = vsyncpa [#allocation3], 1

</llo_original>
